<compile_context>
chip_gen: v7x
topology: tpu7x:2x2x1
jax: 0.10.0
libtpu: 0.0.40
codegen_flags: <defaults>
</compile_context>

<pallas_src>
import jax
import jax.numpy as jnp
import numpy as np
from jax import lax
from jax.experimental import pallas as pl
from jax.experimental.pallas import tpu as pltpu


def _round_up(x, m):
    return ((x + m - 1) // m) * m


def _cluster_dist_kernel(x_ref, c_ref, cn_ref, o_ref):
    """Squared-Euclidean distances from a tile of X rows to all (padded) centres.

    x_ref:  (TN, D)   tile of inputs (VMEM)
    c_ref:  (Kp, D)   full (lane-padded) centre matrix, grid-invariant
    cn_ref: (1, Kp)   precomputed ||c||^2 row, grid-invariant
    o_ref:  (TN, Kp)  output tile (lane-dense, Kp % 128 == 0)
    """
    x = x_ref[...].astype(jnp.float32)          # (TN, D)
    c = c_ref[...].astype(jnp.float32)          # (Kp, D)

    # Cross term on the MXU: contract over D (no explicit transpose needed).
    xc = lax.dot_general(
        x, c, (((1,), (1,)), ((), ())),
        preferred_element_type=jnp.float32)     # (TN, Kp)

    # Row norms of X (cheap: O(TN*D) VPU work + one lane reduce per row).
    xn = jnp.sum(x * x, axis=-1, keepdims=True)  # (TN, 1)

    dist = xn + cn_ref[...] - 2.0 * xc           # (TN, Kp)
    # Clamp tiny negatives from cancellation; distances must be >= 0.
    o_ref[...] = jnp.maximum(dist, 0.0).astype(o_ref.dtype)


def cluster_layer_forward(x, centres, *, tile_n=256):
    """Pallas wrapper: pairwise squared distances, shape (N, K)."""
    N, D = x.shape
    K, Dc = centres.shape
    assert D == Dc, "feature dims must match"

    # Lane-dense output: pad cluster dim up to a multiple of 128.
    Kp = _round_up(max(K, 1), 128)
    # Row tile: multiple of 8, no larger than the (padded) row count.
    tile_n = max(8, min(tile_n, _round_up(N, 8)))
    Np = _round_up(N, tile_n)

    x_p = x if Np == N else jnp.pad(x, ((0, Np - N), (0, 0)))
    c_p = centres if Kp == K else jnp.pad(centres, ((0, Kp - K), (0, 0)))

    # Hoist centre norms out of the per-tile loop (grid-invariant input).
    c_norm = jnp.sum(c_p.astype(jnp.float32) ** 2, axis=-1)[None, :]  # (1, Kp)

    grid = (Np // tile_n,)
    out = pl.pallas_call(
        _cluster_dist_kernel,
        out_shape=jax.ShapeDtypeStruct((Np, Kp), x.dtype),
        grid_spec=pltpu.PrefetchScalarGridSpec(
            num_scalar_prefetch=0,
            grid=grid,
            in_specs=[
                # X: tile over rows, full feature dim (D == full array dim).
                pl.BlockSpec((tile_n, D), lambda i: (i, 0)),
                # centres: whole (Kp, D) matrix, resident across all steps.
                pl.BlockSpec((Kp, D), lambda i: (0, 0)),
                # precomputed ||c||^2, resident across all steps.
                pl.BlockSpec((1, Kp), lambda i: (0, 0)),
            ],
            out_specs=pl.BlockSpec((tile_n, Kp), lambda i: (i, 0)),
        ),
        compiler_params=pltpu.CompilerParams(
            dimension_semantics=("parallel",),
        ),
    )(x_p, c_p, c_norm)

    # Strip row padding and the lane-padded cluster columns.
    return out[:N, :K]


# ----- glue that mirrors the rest of torch_clustering.py in plain JAX -----

def soft_assign_clusters(distances):
    """softmin over clusters (dim=1)."""
    return jax.nn.softmax(-distances, axis=1)


def target_distribution(probs):
    weight = probs ** 2 / jnp.sum(probs, axis=0)
    return weight / jnp.sum(weight, axis=1)[:, None]


if __name__ == "__main__":
    # Small shapes consistent with the module: N points of dim D, K clusters.
    # N chosen non-divisible by the tile to exercise the padding path.
    N, D, K = 200, 32, 8

    key = jax.random.PRNGKey(0)
    kx, kc = jax.random.split(key)

    x = jax.random.normal(kx, (N, D), dtype=jnp.float32)
    # Deterministic parameter init matching nn.Parameter(randn(K, D)/sqrt(D)).
    centres = jax.random.normal(kc, (K, D), dtype=jnp.float32) / np.sqrt(D)

    dists = cluster_layer_forward(x, centres)
    dists = jax.block_until_ready(dists)

    # Reference check (pure JAX, literal-broadcast form of the PyTorch forward).
    ref = jnp.sum((x[:, None, :] - centres[None, :, :]) ** 2, axis=-1)
    np.testing.assert_allclose(np.asarray(dists), np.asarray(ref),
                               rtol=1e-4, atol=1e-4)

    # Exercise the dependent functions once (not the kernel hot path).
    # TODO(synk): optionally fuse softmin into the kernel epilogue when only
    # probabilities are consumed downstream.
    probs = soft_assign_clusters(dists)
    _ = jax.block_until_ready(target_distribution(probs))

    print("KERNEL_OK")
</pallas_src>

<mosaic_0001>
module attributes {stable_mosaic.version = 11 : i64} {
  func.func @_cluster_dist_kernel(%arg0: i32, %arg1: memref<200x32xf32, #tpu.memory_space<vmem>>, %arg2: memref<128x32xf32, #tpu.memory_space<vmem>>, %arg3: memref<1x128xf32, #tpu.memory_space<vmem>>, %arg4: memref<200x128xf32, #tpu.memory_space<vmem>>) attributes {dimension_semantics = [#tpu.dimension_semantics<parallel>], iteration_bounds = array<i64: 1>, scalar_prefetch = 0 : i64, scratch_operands = 0 : i64, tpu.core_type = #tpu.core_type<tc>, window_params = [{transform_indices = @transform_0, window_bounds = array<i64: 200, 32>}, {pipeline_mode = #tpu.pipeline_mode<synchronous>, transform_indices = @transform_1, window_bounds = array<i64: 128, 32>}, {pipeline_mode = #tpu.pipeline_mode<synchronous>, transform_indices = @transform_2, window_bounds = array<i64: 1, 128>}, {transform_indices = @transform_3, window_bounds = array<i64: 200, 128>}]} {
    %c0 = arith.constant 0 : index
    %c0_0 = arith.constant 0 : index
    %0 = vector.load %arg1[%c0, %c0_0] : memref<200x32xf32, #tpu.memory_space<vmem>>, vector<200x32xf32>
    %c0_1 = arith.constant 0 : index
    %c0_2 = arith.constant 0 : index
    %1 = vector.load %arg2[%c0_1, %c0_2] : memref<128x32xf32, #tpu.memory_space<vmem>>, vector<128x32xf32>
    %cst = arith.constant dense<0.000000e+00> : vector<200x128xf32>
    %2 = tpu.matmul %0, %1, %cst {dimension_numbers = #tpu.dot_dimension_numbers<[1], [1], [0], [0], [0, 0, 1, 0], [], []>} : vector<200x32xf32>, vector<128x32xf32>, vector<200x128xf32> -> vector<200x128xf32>
    %3 = arith.mulf %0, %0 : vector<200x32xf32>
    %cst_3 = arith.constant dense<0.000000e+00> : vector<200xf32>
    %4 = vector.multi_reduction <add>, %3, %cst_3 [1] : vector<200x32xf32> to vector<200xf32>
    %5 = vector.shape_cast %4 : vector<200xf32> to vector<200x1xf32>
    %c0_4 = arith.constant 0 : index
    %c0_5 = arith.constant 0 : index
    %6 = vector.load %arg3[%c0_4, %c0_5] : memref<1x128xf32, #tpu.memory_space<vmem>>, vector<1x128xf32>
    %7 = vector.broadcast %5 : vector<200x1xf32> to vector<200x128xf32>
    %8 = vector.broadcast %6 : vector<1x128xf32> to vector<200x128xf32>
    %9 = arith.addf %7, %8 : vector<200x128xf32>
    %cst_6 = arith.constant 2.000000e+00 : f32
    %10 = vector.broadcast %cst_6 : f32 to vector<200x128xf32>
    %11 = arith.mulf %10, %2 : vector<200x128xf32>
    %12 = arith.subf %9, %11 : vector<200x128xf32>
    %cst_7 = arith.constant 0.000000e+00 : f32
    %13 = vector.broadcast %cst_7 : f32 to vector<200x128xf32>
    %14 = arith.maximumf %12, %13 : vector<200x128xf32>
    %c0_8 = arith.constant 0 : index
    %c0_9 = arith.constant 0 : index
    %15 = vector.load %arg4[%c0_8, %c0_9] : memref<200x128xf32, #tpu.memory_space<vmem>>, vector<200x128xf32>
    tpu.vector_store %arg4[%c0_8, %c0_9], %14 {strides = array<i32>} : memref<200x128xf32, #tpu.memory_space<vmem>>, vector<200x128xf32>,
    return
  }
  func.func @transform_0(%arg0: i32) -> (i32, i32) {
    %c0_i32 = arith.constant 0 : i32
    %c0_i32_0 = arith.constant 0 : i32
    return %arg0, %c0_i32 : i32, i32
  }
  func.func @transform_1(%arg0: i32) -> (i32, i32) {
    %c0_i32 = arith.constant 0 : i32
    %c0_i32_0 = arith.constant 0 : i32
    %c0_i32_1 = arith.constant 0 : i32
    return %c0_i32, %c0_i32_0 : i32, i32
  }
  func.func @transform_2(%arg0: i32) -> (i32, i32) {
    %c0_i32 = arith.constant 0 : i32
    %c0_i32_0 = arith.constant 0 : i32
    %c0_i32_1 = arith.constant 0 : i32
    return %c0_i32, %c0_i32_0 : i32, i32
  }
  func.func @transform_3(%arg0: i32) -> (i32, i32) {
    %c0_i32 = arith.constant 0 : i32
    %c0_i32_0 = arith.constant 0 : i32
    return %arg0, %c0_i32 : i32, i32
  }
}

</mosaic_0001>

<llo_original>
// kernel: tpu_custom_call.1
$region0: #{tpu_custom_call.1}
  #allocation0 [shape = 'u32[]', space=smem, size = 0x4, offset = 0x4, fixed_abs, tag = 'smem constant byte address 0x4 - core index']
  #allocation1 [shape = 'u32[144,128]{1,0:T(1,128)}', space=vmem, size = 0x12000, scoped, tag = 'internal scratch']
  %s0 = inlined_call_operand.vmem [shape: f32[200,32], index: 0, kind: input, shape index: {}]
  %s1 = inlined_call_operand.vmem [shape: f32[128,32], index: 1, kind: input, shape index: {}]
  %s2 = inlined_call_operand.vmem [shape: f32[1,128], index: 2, kind: input, shape index: {}]
  %s3 = inlined_call_operand.hbm [shape: f32[200,128], index: 3, kind: output, shape index: {}]
  %s4 = sld [smem:[#allocation0]]
  $region22: #{tpu_custom_call.1} parent=0
    _
  %s6 = ssub.s32 1, %s4
  %s7 = scalar_select 0, %s6, %s4
  $region1: #{tpu_custom_call.1} parent=0
    #allocation2 [shape = 'u8[102400]{0}', space=vmem, size = 0x19000, scoped, tag = 'output window, operand 0, single buffered']
    #allocation3 [shape = 's32[1]{0}', space=sflag, size = 0x4, scoped, tag = 'scoped memory for tpu_custom_call.1']
    %8 = vsyncpa [#allocation3], 0
    // Predicated region
    $region2: #{tpu_custom_call.1} parent=1 // pred_check
      _
    $region3: #{tpu_custom_call.1} parent=1 // pred_check_branch
      %10 = sbr.rel (0) target = $region5
    $region4: #{tpu_custom_call.1} parent=1 // pred_region
      _
    $region5: #{tpu_custom_call.1} parent=1 // pred_fallthru
      _
    // Predicated region
    $region6: #{tpu_custom_call.1} parent=1 // pred_check
      _
    $region7: #{tpu_custom_call.1} parent=1 // pred_check_branch
      %12 = sbr.rel (0) target = $region9
    $region8: #{tpu_custom_call.1} parent=1 // pred_region
      _
    $region9: #{tpu_custom_call.1} parent=1 // pred_fallthru
      _
    // Predicated region
    $region10: #{tpu_custom_call.1} parent=1 // pred_check
      _
    $region11: #{tpu_custom_call.1} parent=1 // pred_check_branch
      %14 = sbr.rel (0) target = $region13
    $region12: #{tpu_custom_call.1} parent=1 // pred_region
      _
    $region13: #{tpu_custom_call.1} parent=1 // pred_fallthru
      _
    %v15 = vld [vmem:[%s0] sm:$0xff]
    %v16 = vld [vmem:[%s0 + $0x8] sm:$0xff]
    %v17 = vld [vmem:[%s0 + $0x10] sm:$0xff]
    %v18 = vld [vmem:[%s0 + $0x18] sm:$0xff]
    %v19 = vld [vmem:[%s0 + $0x20] sm:$0xff]
    %v20 = vld [vmem:[%s0 + $0x28] sm:$0xff]
    %v21 = vld [vmem:[%s0 + $0x30] sm:$0xff]
    %v22 = vld [vmem:[%s0 + $0x38] sm:$0xff]
    %v23 = vld [vmem:[%s0 + $0x40] sm:$0xff]
    %v24 = vld [vmem:[%s0 + $0x48] sm:$0xff]
    %v25 = vld [vmem:[%s0 + $0x50] sm:$0xff]
    %v26 = vld [vmem:[%s0 + $0x58] sm:$0xff]
    %v27 = vld [vmem:[%s0 + $0x60] sm:$0xff]
    %v28 = vld [vmem:[%s0 + $0x68] sm:$0xff]
    %v29 = vld [vmem:[%s0 + $0x70] sm:$0xff]
    %v30 = vld [vmem:[%s0 + $0x78] sm:$0xff]
    %v31 = vld [vmem:[%s0 + $0x80] sm:$0xff]
    %v32 = vld [vmem:[%s0 + $0x88] sm:$0xff]
    %v33 = vld [vmem:[%s0 + $0x90] sm:$0xff]
    %v34 = vld [vmem:[%s0 + $0x98] sm:$0xff]
    %v35 = vld [vmem:[%s0 + $0xa0] sm:$0xff]
    %v36 = vld [vmem:[%s0 + $0xa8] sm:$0xff]
    %v37 = vld [vmem:[%s0 + $0xb0] sm:$0xff]
    %v38 = vld [vmem:[%s0 + $0xb8] sm:$0xff]
    %v39 = vld [vmem:[%s0 + $0xc0] sm:$0xff]
    %v40 = vld [vmem:[%s1] sm:$0xff]
    %v41 = vld [vmem:[%s1 + $0x8] sm:$0xff]
    %v42 = vld [vmem:[%s1 + $0x10] sm:$0xff]
    %v43 = vld [vmem:[%s1 + $0x18] sm:$0xff]
    %v44 = vld [vmem:[%s1 + $0x20] sm:$0xff]
    %v45 = vld [vmem:[%s1 + $0x28] sm:$0xff]
    %v46 = vld [vmem:[%s1 + $0x30] sm:$0xff]
    %v47 = vld [vmem:[%s1 + $0x38] sm:$0xff]
    %v48 = vld [vmem:[%s1 + $0x40] sm:$0xff]
    %v49 = vld [vmem:[%s1 + $0x48] sm:$0xff]
    %v50 = vld [vmem:[%s1 + $0x50] sm:$0xff]
    %v51 = vld [vmem:[%s1 + $0x58] sm:$0xff]
    %v52 = vld [vmem:[%s1 + $0x60] sm:$0xff]
    %v53 = vld [vmem:[%s1 + $0x68] sm:$0xff]
    %v54 = vld [vmem:[%s1 + $0x70] sm:$0xff]
    %v55 = vld [vmem:[%s1 + $0x78] sm:$0xff]
    %vm56 = vcmask 261120
    %v58 = vsel %vm56, %v15, 0
    %v61 = vsel %vm56, %v16, 0
    %v64 = vsel %vm56, %v17, 0
    %v67 = vsel %vm56, %v18, 0
    %v70 = vsel %vm56, %v19, 0
    %v73 = vsel %vm56, %v20, 0
    %v76 = vsel %vm56, %v21, 0
    %v79 = vsel %vm56, %v22, 0
    %v82 = vsel %vm56, %v23, 0
    %v85 = vsel %vm56, %v24, 0
    %v88 = vsel %vm56, %v25, 0
    %v91 = vsel %vm56, %v26, 0
    %v94 = vsel %vm56, %v27, 0
    %v97 = vsel %vm56, %v28, 0
    %v100 = vsel %vm56, %v29, 0
    %v103 = vsel %vm56, %v30, 0
    %v106 = vsel %vm56, %v31, 0
    %v109 = vsel %vm56, %v32, 0
    %v112 = vsel %vm56, %v33, 0
    %v115 = vsel %vm56, %v34, 0
    %v118 = vsel %vm56, %v35, 0
    %v121 = vsel %vm56, %v36, 0
    %v124 = vsel %vm56, %v37, 0
    %v127 = vsel %vm56, %v38, 0
    %v130 = vsel %vm56, %v39, 0
    %v133 = vsel %vm56, %v40, 0
    %v136 = vsel %vm56, %v41, 0
    %v139 = vsel %vm56, %v42, 0
    %v142 = vsel %vm56, %v43, 0
    %v145 = vsel %vm56, %v44, 0
    %v148 = vsel %vm56, %v45, 0
    %v151 = vsel %vm56, %v46, 0
    %v154 = vsel %vm56, %v47, 0
    %v157 = vsel %vm56, %v48, 0
    %v160 = vsel %vm56, %v49, 0
    %v163 = vsel %vm56, %v50, 0
    %v166 = vsel %vm56, %v51, 0
    %v169 = vsel %vm56, %v52, 0
    %v172 = vsel %vm56, %v53, 0
    %v175 = vsel %vm56, %v54, 0
    %v178 = vsel %vm56, %v55, 0
    %180 = vmatprep.subr.mxu0 0.0
    %181 = vmatpush1.xpose.msra.mxu0 %v133
    %182 = vmatprep.subr.mxu0 0.0
    %183 = vmatpush1.xpose.msra.mxu0 %v136
    %184 = vmatprep.subr.mxu0 0.0
    %185 = vmatpush1.xpose.msra.mxu0 %v139
    %186 = vmatprep.subr.mxu0 0.0
    %187 = vmatpush1.xpose.msra.mxu0 %v142
    %188 = vmatprep.subr.mxu0 0.0
    %189 = vmatpush1.xpose.msra.mxu0 %v145
    %190 = vmatprep.subr.mxu0 0.0
    %191 = vmatpush1.xpose.msra.mxu0 %v148
    %192 = vmatprep.subr.mxu0 0.0
    %193 = vmatpush1.xpose.msra.mxu0 %v151
    %194 = vmatprep.subr.mxu0 0.0
    %195 = vmatpush1.xpose.msra.mxu0 %v154
    %196 = vmatprep.subr.mxu0 0.0
    %197 = vmatpush1.xpose.msra.mxu0 %v157
    %198 = vmatprep.subr.mxu0 0.0
    %199 = vmatpush1.xpose.msra.mxu0 %v160
    %200 = vmatprep.subr.mxu0 0.0
    %201 = vmatpush1.xpose.msra.mxu0 %v163
    %202 = vmatprep.subr.mxu0 0.0
    %203 = vmatpush1.xpose.msra.mxu0 %v166
    %204 = vmatprep.subr.mxu0 0.0
    %205 = vmatpush1.xpose.msra.mxu0 %v169
    %206 = vmatprep.subr.mxu0 0.0
    %207 = vmatpush1.xpose.msra.mxu0 %v172
    %208 = vmatprep.subr.mxu0 0.0
    %209 = vmatpush1.xpose.msra.mxu0 %v175
    %210 = vmatprep.subr.mxu0 0.0
    %211 = vmatpush1.xpose.msra.mxu0 %v178
    %212 = vmatprep.subr.mxu0 0.0
    %213 = vmatpush1.xpose.msra.mxu0 0.0
    %214 = vmatprep.subr.mxu0 0.0
    %215 = vmatpush1.xpose.msra.mxu0 0.0
    %216 = vmatprep.subr.mxu0 0.0
    %217 = vmatpush1.xpose.msra.mxu0 0.0
    %218 = vmatprep.subr.mxu0 0.0
    %219 = vmatpush1.xpose.msra.mxu0 0.0
    %220 = vmatprep.subr.mxu0 0.0
    %221 = vmatpush1.xpose.msra.mxu0 0.0
    %222 = vmatprep.subr.mxu0 0.0
    %223 = vmatpush1.xpose.msra.mxu0 0.0
    %224 = vmatprep.subr.mxu0 0.0
    %225 = vmatpush1.xpose.msra.mxu0 0.0
    %226 = vmatprep.subr.mxu0 0.0
    %227 = vmatpush1.xpose.msra.mxu0 0.0
    %228 = vmatprep.subr.mxu0 0.0
    %229 = vmatpush1.xpose.msra.mxu0 0.0
    %230 = vmatprep.subr.mxu0 0.0
    %231 = vmatpush1.xpose.msra.mxu0 0.0
    %232 = vmatprep.subr.mxu0 0.0
    %233 = vmatpush1.xpose.msra.mxu0 0.0
    %234 = vmatprep.subr.mxu0 0.0
    %235 = vmatpush1.xpose.msra.mxu0 0.0
    %236 = vmatprep.subr.mxu0 0.0
    %237 = vmatpush1.xpose.msra.mxu0 0.0
    %238 = vmatprep.subr.mxu0 0.0
    %239 = vmatpush1.xpose.msra.mxu0 0.0
    %240 = vmatprep.subr.mxu0 0.0
    %241 = vmatpush1.xpose.msra.mxu0 0.0
    %242 = vmatprep.subr.mxu0 0.0
    %243 = vmatpush1.xpose.msra.mxu0 0.0
    %244 = vmatprep.mubr.f32.mxu0 0.0
    %245 = vmatmul.mubr.f32.gmra.mrb[0].mxu0 %v58
    %v246 = vpop.f32.mrb[0].mxu0
    %v247 = vadd.f32 0.0, %v246
    %v248 = vpop.f32.mrb[0].mxu0
    %249 = vmatprep.mubr.f32.mxu0 0.0
    %250 = vmatmul.mubr.f32.gmra.mrb[0].mxu0 %v61
    %v251 = vpop.f32.mrb[0].mxu0
    %v252 = vadd.f32 0.0, %v251
    %v253 = vpop.f32.mrb[0].mxu0
    %254 = vmatprep.mubr.f32.mxu0 0.0
    %255 = vmatmul.mubr.f32.gmra.mrb[0].mxu0 %v64
    %v256 = vpop.f32.mrb[0].mxu0
    %v257 = vadd.f32 0.0, %v256
    %v258 = vpop.f32.mrb[0].mxu0
    %259 = vmatprep.mubr.f32.mxu0 0.0
    %260 = vmatmul.mubr.f32.gmra.mrb[0].mxu0 %v67
    %v261 = vpop.f32.mrb[0].mxu0
    %v262 = vadd.f32 0.0, %v261
    %v263 = vpop.f32.mrb[0].mxu0
    %264 = vmatprep.mubr.f32.mxu0 0.0
    %265 = vmatmul.mubr.f32.gmra.mrb[0].mxu0 %v70
    %v266 = vpop.f32.mrb[0].mxu0
    %v267 = vadd.f32 0.0, %v266
    %v268 = vpop.f32.mrb[0].mxu0
    %269 = vmatprep.mubr.f32.mxu0 0.0
    %270 = vmatmul.mubr.f32.gmra.mrb[0].mxu0 %v73
    %v271 = vpop.f32.mrb[0].mxu0
    %v272 = vadd.f32 0.0, %v271
    %v273 = vpop.f32.mrb[0].mxu0
    %274 = vmatprep.mubr.f32.mxu0 0.0
    %275 = vmatmul.mubr.f32.gmra.mrb[0].mxu0 %v76
    %v276 = vpop.f32.mrb[0].mxu0
    %v277 = vadd.f32 0.0, %v276
    %v278 = vpop.f32.mrb[0].mxu0
    %279 = vmatprep.mubr.f32.mxu0 0.0
    %280 = vmatmul.mubr.f32.gmra.mrb[0].mxu0 %v79
    %v281 = vpop.f32.mrb[0].mxu0
    %v282 = vadd.f32 0.0, %v281
    %v283 = vpop.f32.mrb[0].mxu0
    %284 = vmatprep.mubr.f32.mxu0 0.0
    %285 = vmatmul.mubr.f32.gmra.mrb[0].mxu0 %v82
    %v286 = vpop.f32.mrb[0].mxu0
    %v287 = vadd.f32 0.0, %v286
    %v288 = vpop.f32.mrb[0].mxu0
    %289 = vmatprep.mubr.f32.mxu0 0.0
    %290 = vmatmul.mubr.f32.gmra.mrb[0].mxu0 %v85
    %v291 = vpop.f32.mrb[0].mxu0
    %v292 = vadd.f32 0.0, %v291
    %v293 = vpop.f32.mrb[0].mxu0
    %294 = vmatprep.mubr.f32.mxu0 0.0
    %295 = vmatmul.mubr.f32.gmra.mrb[0].mxu0 %v88
    %v296 = vpop.f32.mrb[0].mxu0
    %v297 = vadd.f32 0.0, %v296
    %v298 = vpop.f32.mrb[0].mxu0
    %299 = vmatprep.mubr.f32.mxu0 0.0
    %300 = vmatmul.mubr.f32.gmra.mrb[0].mxu0 %v91
    %v301 = vpop.f32.mrb[0].mxu0
    %v302 = vadd.f32 0.0, %v301
    %v303 = vpop.f32.mrb[0].mxu0
    %304 = vmatprep.mubr.f32.mxu0 0.0
    %305 = vmatmul.mubr.f32.gmra.mrb[0].mxu0 %v94
    %v306 = vpop.f32.mrb[0].mxu0
    %v307 = vadd.f32 0.0, %v306
    %v308 = vpop.f32.mrb[0].mxu0
    %309 = vmatprep.mubr.f32.mxu0 0.0
    %310 = vmatmul.mubr.f32.gmra.mrb[0].mxu0 %v97
    %v311 = vpop.f32.mrb[0].mxu0
    %v312 = vadd.f32 0.0, %v311
    %v313 = vpop.f32.mrb[0].mxu0
    %314 = vmatprep.mubr.f32.mxu0 0.0
    %315 = vmatmul.mubr.f32.gmra.mrb[0].mxu0 %v100
    %v316 = vpop.f32.mrb[0].mxu0
    %v317 = vadd.f32 0.0, %v316
    %v318 = vpop.f32.mrb[0].mxu0
    %319 = vmatprep.mubr.f32.mxu0 0.0
    %320 = vmatmul.mubr.f32.gmra.mrb[0].mxu0 %v103
    %v321 = vpop.f32.mrb[0].mxu0
    %v322 = vadd.f32 0.0, %v321
    %v323 = vpop.f32.mrb[0].mxu0
    %324 = vmatprep.mubr.f32.mxu0 0.0
    %325 = vmatmul.mubr.f32.gmra.mrb[0].mxu0 %v106
    %v326 = vpop.f32.mrb[0].mxu0
    %v327 = vadd.f32 0.0, %v326
    %v328 = vpop.f32.mrb[0].mxu0
    %329 = vmatprep.mubr.f32.mxu0 0.0
    %330 = vmatmul.mubr.f32.gmra.mrb[0].mxu0 %v109
    %v331 = vpop.f32.mrb[0].mxu0
    %v332 = vadd.f32 0.0, %v331
    %v333 = vpop.f32.mrb[0].mxu0
    %334 = vmatprep.mubr.f32.mxu0 0.0
    %335 = vmatmul.mubr.f32.gmra.mrb[0].mxu0 %v112
    %v336 = vpop.f32.mrb[0].mxu0
    %v337 = vadd.f32 0.0, %v336
    %v338 = vpop.f32.mrb[0].mxu0
    %339 = vmatprep.mubr.f32.mxu0 0.0
    %340 = vmatmul.mubr.f32.gmra.mrb[0].mxu0 %v115
    %v341 = vpop.f32.mrb[0].mxu0
    %v342 = vadd.f32 0.0, %v341
    %v343 = vpop.f32.mrb[0].mxu0
    %344 = vmatprep.mubr.f32.mxu0 0.0
    %345 = vmatmul.mubr.f32.gmra.mrb[0].mxu0 %v118
    %v346 = vpop.f32.mrb[0].mxu0
    %v347 = vadd.f32 0.0, %v346
    %v348 = vpop.f32.mrb[0].mxu0
    %349 = vmatprep.mubr.f32.mxu0 0.0
    %350 = vmatmul.mubr.f32.gmra.mrb[0].mxu0 %v121
    %v351 = vpop.f32.mrb[0].mxu0
    %v352 = vadd.f32 0.0, %v351
    %v353 = vpop.f32.mrb[0].mxu0
    %354 = vmatprep.mubr.f32.mxu0 0.0
    %355 = vmatmul.mubr.f32.gmra.mrb[0].mxu0 %v124
    %v356 = vpop.f32.mrb[0].mxu0
    %v357 = vadd.f32 0.0, %v356
    %v358 = vpop.f32.mrb[0].mxu0
    %359 = vmatprep.mubr.f32.mxu0 0.0
    %360 = vmatmul.mubr.f32.gmra.mrb[0].mxu0 %v127
    %v361 = vpop.f32.mrb[0].mxu0
    %v362 = vadd.f32 0.0, %v361
    %v363 = vpop.f32.mrb[0].mxu0
    %364 = vmatprep.mubr.f32.mxu0 0.0
    %365 = vmatmul.mubr.f32.gmra.mrb[0].mxu0 %v130
    %v366 = vpop.f32.mrb[0].mxu0
    %v367 = vadd.f32 0.0, %v366
    %v368 = vpop.f32.mrb[0].mxu0
    %369 = vdwg.mxu0
    %v370 = vmul.f32 %v15, %v15
    %v371 = vmul.f32 %v16, %v16
    %v372 = vmul.f32 %v17, %v17
    %v373 = vmul.f32 %v18, %v18
    %v374 = vmul.f32 %v19, %v19
    %v375 = vmul.f32 %v20, %v20
    %v376 = vmul.f32 %v21, %v21
    %v377 = vmul.f32 %v22, %v22
    %v378 = vmul.f32 %v23, %v23
    %v379 = vmul.f32 %v24, %v24
    %v380 = vmul.f32 %v25, %v25
    %v381 = vmul.f32 %v26, %v26
    %v382 = vmul.f32 %v27, %v27
    %v383 = vmul.f32 %v28, %v28
    %v384 = vmul.f32 %v29, %v29
    %v385 = vmul.f32 %v30, %v30
    %v386 = vmul.f32 %v31, %v31
    %v387 = vmul.f32 %v32, %v32
    %v388 = vmul.f32 %v33, %v33
    %v389 = vmul.f32 %v34, %v34
    %v390 = vmul.f32 %v35, %v35
    %v391 = vmul.f32 %v36, %v36
    %v392 = vmul.f32 %v37, %v37
    %v393 = vmul.f32 %v38, %v38
    %v394 = vmul.f32 %v39, %v39
    %v395 = vsel %vm56, %v370, 0.0
    %396 = vadd.xlane.f32.xlu0 %v395
    %v397 = vpop.xlane.xlu0 %396
    %v398 = vsel %vm56, %v371, 0.0
    %399 = vadd.xlane.f32.xlu0 %v398
    %v400 = vpop.xlane.xlu0 %399
    %v401 = vsel %vm56, %v372, 0.0
    %402 = vadd.xlane.f32.xlu0 %v401
    %v403 = vpop.xlane.xlu0 %402
    %v404 = vsel %vm56, %v373, 0.0
    %405 = vadd.xlane.f32.xlu0 %v404
    %v406 = vpop.xlane.xlu0 %405
    %v407 = vsel %vm56, %v374, 0.0
    %408 = vadd.xlane.f32.xlu0 %v407
    %v409 = vpop.xlane.xlu0 %408
    %v410 = vsel %vm56, %v375, 0.0
    %411 = vadd.xlane.f32.xlu0 %v410
    %v412 = vpop.xlane.xlu0 %411
    %v413 = vsel %vm56, %v376, 0.0
    %414 = vadd.xlane.f32.xlu0 %v413
    %v415 = vpop.xlane.xlu0 %414
    %v416 = vsel %vm56, %v377, 0.0
    %417 = vadd.xlane.f32.xlu0 %v416
    %v418 = vpop.xlane.xlu0 %417
    %v419 = vsel %vm56, %v378, 0.0
    %420 = vadd.xlane.f32.xlu0 %v419
    %v421 = vpop.xlane.xlu0 %420
    %v422 = vsel %vm56, %v379, 0.0
    %423 = vadd.xlane.f32.xlu0 %v422
    %v424 = vpop.xlane.xlu0 %423
    %v425 = vsel %vm56, %v380, 0.0
    %426 = vadd.xlane.f32.xlu0 %v425
    %v427 = vpop.xlane.xlu0 %426
    %v428 = vsel %vm56, %v381, 0.0
    %429 = vadd.xlane.f32.xlu0 %v428
    %v430 = vpop.xlane.xlu0 %429
    %v431 = vsel %vm56, %v382, 0.0
    %432 = vadd.xlane.f32.xlu0 %v431
    %v433 = vpop.xlane.xlu0 %432
    %v434 = vsel %vm56, %v383, 0.0
    %435 = vadd.xlane.f32.xlu0 %v434
    %v436 = vpop.xlane.xlu0 %435
    %v437 = vsel %vm56, %v384, 0.0
    %438 = vadd.xlane.f32.xlu0 %v437
    %v439 = vpop.xlane.xlu0 %438
    %v440 = vsel %vm56, %v385, 0.0
    %441 = vadd.xlane.f32.xlu0 %v440
    %v442 = vpop.xlane.xlu0 %441
    %v443 = vsel %vm56, %v386, 0.0
    %444 = vadd.xlane.f32.xlu0 %v443
    %v445 = vpop.xlane.xlu0 %444
    %v446 = vsel %vm56, %v387, 0.0
    %447 = vadd.xlane.f32.xlu0 %v446
    %v448 = vpop.xlane.xlu0 %447
    %v449 = vsel %vm56, %v388, 0.0
    %450 = vadd.xlane.f32.xlu0 %v449
    %v451 = vpop.xlane.xlu0 %450
    %v452 = vsel %vm56, %v389, 0.0
    %453 = vadd.xlane.f32.xlu0 %v452
    %v454 = vpop.xlane.xlu0 %453
    %v455 = vsel %vm56, %v390, 0.0
    %456 = vadd.xlane.f32.xlu0 %v455
    %v457 = vpop.xlane.xlu0 %456
    %v458 = vsel %vm56, %v391, 0.0
    %459 = vadd.xlane.f32.xlu0 %v458
    %v460 = vpop.xlane.xlu0 %459
    %v461 = vsel %vm56, %v392, 0.0
    %462 = vadd.xlane.f32.xlu0 %v461
    %v463 = vpop.xlane.xlu0 %462
    %v464 = vsel %vm56, %v393, 0.0
    %465 = vadd.xlane.f32.xlu0 %v464
    %v466 = vpop.xlane.xlu0 %465
    %v467 = vsel %vm56, %v394, 0.0
    %468 = vadd.xlane.f32.xlu0 %v467
    %v469 = vpop.xlane.xlu0 %468
    %v470 = vld [vmem:[%s2] sm:$0x1]
    %v472 = vlaneseq
    %v473 = vshrl.u32 %v472, 7
    %v474 = vsub.s32 0, %v473
    %v475 = vrot.slane %v470, %v474
    %v477 = vadd.f32 %v397, %v475
    %v478 = vadd.f32 %v400, %v475
    %v479 = vadd.f32 %v403, %v475
    %v480 = vadd.f32 %v406, %v475
    %v481 = vadd.f32 %v409, %v475
    %v482 = vadd.f32 %v412, %v475
    %v483 = vadd.f32 %v415, %v475
    %v484 = vadd.f32 %v418, %v475
    %v485 = vadd.f32 %v421, %v475
    %v486 = vadd.f32 %v424, %v475
    %v487 = vadd.f32 %v427, %v475
    %v488 = vadd.f32 %v430, %v475
    %v489 = vadd.f32 %v433, %v475
    %v490 = vadd.f32 %v436, %v475
    %v491 = vadd.f32 %v439, %v475
    %v492 = vadd.f32 %v442, %v475
    %v493 = vadd.f32 %v445, %v475
    %v494 = vadd.f32 %v448, %v475
    %v495 = vadd.f32 %v451, %v475
    %v496 = vadd.f32 %v454, %v475
    %v497 = vadd.f32 %v457, %v475
    %v498 = vadd.f32 %v460, %v475
    %v499 = vadd.f32 %v463, %v475
    %v500 = vadd.f32 %v466, %v475
    %v501 = vadd.f32 %v469, %v475
    %v502 = vmul.f32 %v247, 2.0
    %v503 = vmul.f32 %v252, 2.0
    %v504 = vmul.f32 %v257, 2.0
    %v505 = vmul.f32 %v262, 2.0
    %v506 = vmul.f32 %v267, 2.0
    %v507 = vmul.f32 %v272, 2.0
    %v508 = vmul.f32 %v277, 2.0
    %v509 = vmul.f32 %v282, 2.0
    %v510 = vmul.f32 %v287, 2.0
    %v511 = vmul.f32 %v292, 2.0
    %v512 = vmul.f32 %v297, 2.0
    %v513 = vmul.f32 %v302, 2.0
    %v514 = vmul.f32 %v307, 2.0
    %v515 = vmul.f32 %v312, 2.0
    %v516 = vmul.f32 %v317, 2.0
    %v517 = vmul.f32 %v322, 2.0
    %v518 = vmul.f32 %v327, 2.0
    %v519 = vmul.f32 %v332, 2.0
    %v520 = vmul.f32 %v337, 2.0
    %v521 = vmul.f32 %v342, 2.0
    %v522 = vmul.f32 %v347, 2.0
    %v523 = vmul.f32 %v352, 2.0
    %v524 = vmul.f32 %v357, 2.0
    %v525 = vmul.f32 %v362, 2.0
    %v526 = vmul.f32 %v367, 2.0
    %v527 = vsub.f32 %v477, %v502
    %v528 = vsub.f32 %v478, %v503
    %v529 = vsub.f32 %v479, %v504
    %v530 = vsub.f32 %v480, %v505
    %v531 = vsub.f32 %v481, %v506
    %v532 = vsub.f32 %v482, %v507
    %v533 = vsub.f32 %v483, %v508
    %v534 = vsub.f32 %v484, %v509
    %v535 = vsub.f32 %v485, %v510
    %v536 = vsub.f32 %v486, %v511
    %v537 = vsub.f32 %v487, %v512
    %v538 = vsub.f32 %v488, %v513
    %v539 = vsub.f32 %v489, %v514
    %v540 = vsub.f32 %v490, %v515
    %v541 = vsub.f32 %v491, %v516
    %v542 = vsub.f32 %v492, %v517
    %v543 = vsub.f32 %v493, %v518
    %v544 = vsub.f32 %v494, %v519
    %v545 = vsub.f32 %v495, %v520
    %v546 = vsub.f32 %v496, %v521
    %v547 = vsub.f32 %v497, %v522
    %v548 = vsub.f32 %v498, %v523
    %v549 = vsub.f32 %v499, %v524
    %v550 = vsub.f32 %v500, %v525
    %v551 = vsub.f32 %v501, %v526
    %v552 = vmax.f32 %v527, 0.0
    %v553 = vmax.f32 %v528, 0.0
    %v554 = vmax.f32 %v529, 0.0
    %v555 = vmax.f32 %v530, 0.0
    %v556 = vmax.f32 %v531, 0.0
    %v557 = vmax.f32 %v532, 0.0
    %v558 = vmax.f32 %v533, 0.0
    %v559 = vmax.f32 %v534, 0.0
    %v560 = vmax.f32 %v535, 0.0
    %v561 = vmax.f32 %v536, 0.0
    %v562 = vmax.f32 %v537, 0.0
    %v563 = vmax.f32 %v538, 0.0
    %v564 = vmax.f32 %v539, 0.0
    %v565 = vmax.f32 %v540, 0.0
    %v566 = vmax.f32 %v541, 0.0
    %v567 = vmax.f32 %v542, 0.0
    %v568 = vmax.f32 %v543, 0.0
    %v569 = vmax.f32 %v544, 0.0
    %v570 = vmax.f32 %v545, 0.0
    %v571 = vmax.f32 %v546, 0.0
    %v572 = vmax.f32 %v547, 0.0
    %v573 = vmax.f32 %v548, 0.0
    %v574 = vmax.f32 %v549, 0.0
    %v575 = vmax.f32 %v550, 0.0
    %v576 = vmax.f32 %v551, 0.0
    %577 = vst [vmem:[#allocation2] sm:$0xff] %v552
    %578 = vst [vmem:[#allocation2 + $0x8] sm:$0xff] %v553
    %579 = vst [vmem:[#allocation2 + $0x10] sm:$0xff] %v554
    %580 = vst [vmem:[#allocation2 + $0x18] sm:$0xff] %v555
    %581 = vst [vmem:[#allocation2 + $0x20] sm:$0xff] %v556
    %582 = vst [vmem:[#allocation2 + $0x28] sm:$0xff] %v557
    %583 = vst [vmem:[#allocation2 + $0x30] sm:$0xff] %v558
    %584 = vst [vmem:[#allocation2 + $0x38] sm:$0xff] %v559
    %585 = vst [vmem:[#allocation2 + $0x40] sm:$0xff] %v560
    %586 = vst [vmem:[#allocation2 + $0x48] sm:$0xff] %v561
    %587 = vst [vmem:[#allocation2 + $0x50] sm:$0xff] %v562
    %588 = vst [vmem:[#allocation2 + $0x58] sm:$0xff] %v563
    %589 = vst [vmem:[#allocation2 + $0x60] sm:$0xff] %v564
    %590 = vst [vmem:[#allocation2 + $0x68] sm:$0xff] %v565
    %591 = vst [vmem:[#allocation2 + $0x70] sm:$0xff] %v566
    %592 = vst [vmem:[#allocation2 + $0x78] sm:$0xff] %v567
    %593 = vst [vmem:[#allocation2 + $0x80] sm:$0xff] %v568
    %594 = vst [vmem:[#allocation2 + $0x88] sm:$0xff] %v569
    %595 = vst [vmem:[#allocation2 + $0x90] sm:$0xff] %v570
    %596 = vst [vmem:[#allocation2 + $0x98] sm:$0xff] %v571
    %597 = vst [vmem:[#allocation2 + $0xa0] sm:$0xff] %v572
    %598 = vst [vmem:[#allocation2 + $0xa8] sm:$0xff] %v573
    %599 = vst [vmem:[#allocation2 + $0xb0] sm:$0xff] %v574
    %600 = vst [vmem:[#allocation2 + $0xb8] sm:$0xff] %v575
    %601 = vst [vmem:[#allocation2 + $0xc0] sm:$0xff] %v576
    // Predicated region
    $region14: #{tpu_custom_call.1} parent=1 // pred_check
      _
    $region15: #{tpu_custom_call.1} parent=1 // pred_check_branch
      %603 = sbr.rel (0) target = $region17
    $region16: #{tpu_custom_call.1} parent=1 // pred_region
      %s605 = ssub.s32 3200, 3200
      %606 = vsyncadd [#allocation3], %s605
      %s607 = sshll.u32 [#allocation2], 4
      %s608 = int_to_ptr.vmem [resolvable:$true] %s607
      %613 = dma.vmem_to_hbm [thread:$0]  %s608, 3200, %s3, [#allocation3], 128, 128, 8
    $region17: #{tpu_custom_call.1} parent=1 // pred_fallthru
      _
    // Predicated region
    $region18: #{tpu_custom_call.1} parent=1 // pred_check
      _
    $region19: #{tpu_custom_call.1} parent=1 // pred_check_branch
      %615 = sbr.rel (0) target = $region21
    $region20: #{tpu_custom_call.1} parent=1 // pred_region
      %616 = dma.done [#allocation3], 3200
    $region21: #{tpu_custom_call.1} parent=1 // pred_fallthru
      _
    %617 = vsyncpa [#allocation3], 1

</llo_original>
